<compile_context>
chip_gen: v5e
topology: v5e:2x2
jax: 0.10.0
libtpu: 0.0.40
codegen_flags: <defaults>
</compile_context>

<pallas_src>
import jax
import jax.numpy as jnp
from jax.experimental import pallas as pl
from jax.experimental.pallas import tpu as pltpu

BN_EPS = 1e-5


def mlp_kernel(x_ref, w1_ref, w2_ref, w3_ref, w4_ref, b_ref, o_ref):
    """One batch tile of the fused MLP. BN already folded into W/b.

    x_ref : (TB, in_dim)  bf16
    w1/w2/w3 : bf16 weight tiles (VMEM-resident)
    w4_ref : (1, 64) f32 row for the VPU reduce
    b_ref : (4, 128) f32 packed per-layer biases
    o_ref : (1, TB) f32 lane-dense output row
    """
    x = x_ref[...]                     # (TB, in_dim) bf16
    b = b_ref[...]                     # (4, 128) f32

    # Layer 1: Linear(in,64) + folded BN + ReLU   (f32 accumulate, bf16 out)
    h = jnp.dot(x, w1_ref[...], preferred_element_type=jnp.float32) + b[0:1, 0:64]
    h = jnp.maximum(h, 0.0).astype(jnp.bfloat16)
    # Layer 2: Linear(64,128) + folded BN + ReLU
    h = jnp.dot(h, w2_ref[...], preferred_element_type=jnp.float32) + b[1:2, :]
    h = jnp.maximum(h, 0.0).astype(jnp.bfloat16)
    # Layer 3: Linear(128,64) + folded BN + ReLU  (keep f32 for the VPU reduce)
    h = jnp.dot(h, w3_ref[...], preferred_element_type=jnp.float32) + b[2:3, 0:64]
    h = jnp.maximum(h, 0.0)

    # Layer 4: Linear(64 -> 1) + ReLU.  N=1 MXU matmul wastes the systolic
    # array; do VPU multiply + XLU lane reduce, then store lane-dense.
    out = jnp.sum(h * w4_ref[...], axis=-1)[None, :] + b[3:4, 0:1]   # (1, TB)
    o_ref[...] = jnp.maximum(out, 0.0)


def make_params(input_dim, key):
    """PyTorch-default init: Linear U(+-1/sqrt(fan_in)); BatchNorm1d g=1, be=0, rm=0, rv=1."""
    dims = [(input_dim, 64), (64, 128), (128, 64), (64, 1)]
    params = {}
    keys = jax.random.split(key, 2 * len(dims))
    for i, (fan_in, fan_out) in enumerate(dims):
        bound = 1.0 / (fan_in ** 0.5)
        # stored as [in, out] (pre-transposed from PyTorch's [out, in])
        params[f"w{i+1}"] = jax.random.uniform(
            keys[2 * i], (fan_in, fan_out), jnp.float32, -bound, bound)
        params[f"b{i+1}"] = jax.random.uniform(
            keys[2 * i + 1], (1, fan_out), jnp.float32, -bound, bound)
    for i, (_, fan_out) in enumerate(dims[:3]):
        params[f"g{i+1}"] = jnp.ones((1, fan_out), jnp.float32)
        params[f"be{i+1}"] = jnp.zeros((1, fan_out), jnp.float32)
        params[f"rm{i+1}"] = jnp.zeros((1, fan_out), jnp.float32)
        params[f"rv{i+1}"] = jnp.ones((1, fan_out), jnp.float32)
    return params


def fold_bn(params):
    """Fold eval-mode BatchNorm1d into the preceding Linear; pack biases into one (4,128) array."""
    folded = {}
    for i in (1, 2, 3):
        scale = params[f"g{i}"] * jax.lax.rsqrt(params[f"rv{i}"] + BN_EPS)   # (1, fan_out)
        folded[f"w{i}"] = params[f"w{i}"] * scale                            # column-wise
        folded[f"b{i}"] = (params[f"b{i}"] - params[f"rm{i}"]) * scale + params[f"be{i}"]
    folded["w4"] = params["w4"]          # (64, 1)
    folded["b4"] = params["b4"]          # (1, 1)
    bp = jnp.zeros((4, 128), jnp.float32)
    bp = bp.at[0, :64].set(folded["b1"][0])
    bp = bp.at[1, :128].set(folded["b2"][0])
    bp = bp.at[2, :64].set(folded["b3"][0])
    bp = bp.at[3, 0].set(folded["b4"][0, 0])
    folded["b_packed"] = bp
    return folded


def mlp_forward(x, folded, *, tile_b=1024):
    """Batch-tiled, BN-folded, bf16-input fused MLP forward (eval semantics)."""
    batch, in_dim = x.shape

    # Small-batch fast path: shrink the tile to round_up(batch, 128) so tiny
    # calls don't compute on hundreds of zero-padded rows. tile_b stays a
    # multiple of 128 so the lane-dense output block is unmasked-vst friendly.
    tile_b = int(min(tile_b, max(128, -(-batch // 128) * 128)))
    n_tiles = -(-batch // tile_b)
    b_pad = n_tiles * tile_b
    if b_pad != batch:
        x = jnp.pad(x, ((0, b_pad - batch), (0, 0)))

    # bf16 on the streamed input + MXU weights; everything else stays f32.
    x_bf = x.astype(jnp.bfloat16)
    w1 = folded["w1"].astype(jnp.bfloat16)
    w2 = folded["w2"].astype(jnp.bfloat16)
    w3 = folded["w3"].astype(jnp.bfloat16)
    w4_row = folded["w4"].T.astype(jnp.float32)   # (1, 64) row for the VPU reduce
    b_packed = folded["b_packed"]                 # (4, 128) f32

    def const_spec(shape):
        # Full-array block, constant index -> weight stays VMEM-resident across steps.
        return pl.BlockSpec(shape, lambda i: (0, 0))

    # VMEM budget: double-buffered x (lane-padded bf16), double-buffered
    # lane-dense output, f32 intermediates, resident weights + headroom.
    vmem_budget = int(
        2 * tile_b * max(in_dim, 128) * 2      # x, 2 buffers, bf16, lane-padded
        + 2 * tile_b * 4                       # out row, 2 buffers, f32
        + tile_b * (64 + 128 + 64) * 4         # intermediates
        + 4 * 1024 * 1024                      # weights/biases + headroom
    )
    vmem_limit = min(max(vmem_budget, 8 * 1024 * 1024), 48 * 1024 * 1024)

    out = pl.pallas_call(
        mlp_kernel,
        out_shape=jax.ShapeDtypeStruct((n_tiles, tile_b), jnp.float32),
        grid=(n_tiles,),
        in_specs=[
            pl.BlockSpec((tile_b, in_dim), lambda i: (i, 0)),   # x: streamed per batch tile
            const_spec(w1.shape),
            const_spec(w2.shape),
            const_spec(w3.shape),
            const_spec(w4_row.shape),
            const_spec(b_packed.shape),
        ],
        # Lane-dense output: one (1, tile_b) row per grid step (unmasked stores).
        out_specs=pl.BlockSpec((1, tile_b), lambda i: (i, 0)),
        compiler_params=pltpu.CompilerParams(
            dimension_semantics=("parallel",),   # batch tiles are independent
            vmem_limit_bytes=vmem_limit,         # sized for v7x's 64 MiB VMEM too
        ),
    )(x_bf, w1, w2, w3, w4_row, b_packed)

    return out.reshape(b_pad, 1)[:batch]


def mlp_reference(x, params):
    """Pure-JAX f32 eval-mode reference on the UNfolded params (validates BN folding too)."""
    h = x
    for i in (1, 2, 3):
        h = h @ params[f"w{i}"] + params[f"b{i}"]
        scale = params[f"g{i}"] * jax.lax.rsqrt(params[f"rv{i}"] + BN_EPS)
        h = (h - params[f"rm{i}"]) * scale + params[f"be{i}"]
        h = jnp.maximum(h, 0.0)          # Dropout == identity in eval
    out = h @ params["w4"] + params["b4"]
    return jnp.maximum(out, 0.0)


if __name__ == "__main__":
    key = jax.random.PRNGKey(0)
    k_x, k_p = jax.random.split(key)

    batch, input_dim = 8, 32
    x = jax.random.normal(k_x, (batch, input_dim), jnp.float32)

    params = make_params(input_dim, k_p)
    folded = fold_bn(params)

    out = jax.block_until_ready(mlp_forward(x, folded))
    ref = mlp_reference(x, params)

    assert out.shape == (batch, 1), out.shape
    # Kernel runs the matmul inputs in bf16 (f32 accumulate); compare against
    # the f32 reference with a bf16-appropriate tolerance.
    assert jnp.allclose(out, ref, atol=5e-2, rtol=5e-2), "mismatch vs reference"

    print("KERNEL_OK")
</pallas_src>

<mosaic_0001>
module attributes {stable_mosaic.version = 11 : i64} {
  func.func @mlp_kernel(%arg0: i32, %arg1: memref<128x32xbf16, #tpu.memory_space<vmem>>, %arg2: memref<32x64xbf16, #tpu.memory_space<vmem>>, %arg3: memref<64x128xbf16, #tpu.memory_space<vmem>>, %arg4: memref<128x64xbf16, #tpu.memory_space<vmem>>, %arg5: memref<1x64xf32, #tpu.memory_space<vmem>>, %arg6: memref<4x128xf32, #tpu.memory_space<vmem>>, %arg7: memref<1x128xf32, #tpu.memory_space<vmem>>) attributes {dimension_semantics = [#tpu.dimension_semantics<parallel>], iteration_bounds = array<i64: 1>, scalar_prefetch = 0 : i64, scratch_operands = 0 : i64, tpu.core_type = #tpu.core_type<tc>, window_params = [{transform_indices = @transform_0, window_bounds = array<i64: 128, 32>}, {pipeline_mode = #tpu.pipeline_mode<synchronous>, transform_indices = @transform_1, window_bounds = array<i64: 32, 64>}, {pipeline_mode = #tpu.pipeline_mode<synchronous>, transform_indices = @transform_2, window_bounds = array<i64: 64, 128>}, {pipeline_mode = #tpu.pipeline_mode<synchronous>, transform_indices = @transform_3, window_bounds = array<i64: 128, 64>}, {pipeline_mode = #tpu.pipeline_mode<synchronous>, transform_indices = @transform_4, window_bounds = array<i64: 1, 64>}, {pipeline_mode = #tpu.pipeline_mode<synchronous>, transform_indices = @transform_5, window_bounds = array<i64: 4, 128>}, {transform_indices = @transform_6, window_bounds = array<i64: 1, 128>}]} {
    %c0 = arith.constant 0 : index
    %c0_0 = arith.constant 0 : index
    %0 = vector.load %arg1[%c0, %c0_0] : memref<128x32xbf16, #tpu.memory_space<vmem>>, vector<128x32xbf16>
    %c0_1 = arith.constant 0 : index
    %c0_2 = arith.constant 0 : index
    %1 = vector.load %arg6[%c0_1, %c0_2] : memref<4x128xf32, #tpu.memory_space<vmem>>, vector<4x128xf32>
    %c0_3 = arith.constant 0 : index
    %c0_4 = arith.constant 0 : index
    %2 = vector.load %arg2[%c0_3, %c0_4] : memref<32x64xbf16, #tpu.memory_space<vmem>>, vector<32x64xbf16>
    %cst = arith.constant dense<0.000000e+00> : vector<128x64xf32>
    %3 = tpu.matmul %0, %2, %cst {dimension_numbers = #tpu.dot_dimension_numbers<[1], [0], [0], [1], [0, 0, 1, 1], [], []>} : vector<128x32xbf16>, vector<32x64xbf16>, vector<128x64xf32> -> vector<128x64xf32>
    %4 = vector.extract_strided_slice %1 {offsets = [0, 0], sizes = [1, 64], strides = [1, 1]} : vector<4x128xf32> to vector<1x64xf32>
    %5 = vector.broadcast %4 : vector<1x64xf32> to vector<128x64xf32>
    %6 = arith.addf %3, %5 : vector<128x64xf32>
    %cst_5 = arith.constant 0.000000e+00 : f32
    %7 = vector.broadcast %cst_5 : f32 to vector<128x64xf32>
    %8 = arith.maximumf %6, %7 : vector<128x64xf32>
    %9 = arith.truncf %8 : vector<128x64xf32> to vector<128x64xbf16>
    %c0_6 = arith.constant 0 : index
    %c0_7 = arith.constant 0 : index
    %10 = vector.load %arg3[%c0_6, %c0_7] : memref<64x128xbf16, #tpu.memory_space<vmem>>, vector<64x128xbf16>
    %cst_8 = arith.constant dense<0.000000e+00> : vector<128x128xf32>
    %11 = tpu.matmul %9, %10, %cst_8 {dimension_numbers = #tpu.dot_dimension_numbers<[1], [0], [0], [1], [0, 0, 1, 1], [], []>} : vector<128x64xbf16>, vector<64x128xbf16>, vector<128x128xf32> -> vector<128x128xf32>
    %12 = vector.extract_strided_slice %1 {offsets = [1, 0], sizes = [1, 128], strides = [1, 1]} : vector<4x128xf32> to vector<1x128xf32>
    %13 = vector.broadcast %12 : vector<1x128xf32> to vector<128x128xf32>
    %14 = arith.addf %11, %13 : vector<128x128xf32>
    %cst_9 = arith.constant 0.000000e+00 : f32
    %15 = vector.broadcast %cst_9 : f32 to vector<128x128xf32>
    %16 = arith.maximumf %14, %15 : vector<128x128xf32>
    %17 = arith.truncf %16 : vector<128x128xf32> to vector<128x128xbf16>
    %c0_10 = arith.constant 0 : index
    %c0_11 = arith.constant 0 : index
    %18 = vector.load %arg4[%c0_10, %c0_11] : memref<128x64xbf16, #tpu.memory_space<vmem>>, vector<128x64xbf16>
    %cst_12 = arith.constant dense<0.000000e+00> : vector<128x64xf32>
    %19 = tpu.matmul %17, %18, %cst_12 {dimension_numbers = #tpu.dot_dimension_numbers<[1], [0], [0], [1], [0, 0, 1, 1], [], []>} : vector<128x128xbf16>, vector<128x64xbf16>, vector<128x64xf32> -> vector<128x64xf32>
    %20 = vector.extract_strided_slice %1 {offsets = [2, 0], sizes = [1, 64], strides = [1, 1]} : vector<4x128xf32> to vector<1x64xf32>
    %21 = vector.broadcast %20 : vector<1x64xf32> to vector<128x64xf32>
    %22 = arith.addf %19, %21 : vector<128x64xf32>
    %cst_13 = arith.constant 0.000000e+00 : f32
    %23 = vector.broadcast %cst_13 : f32 to vector<128x64xf32>
    %24 = arith.maximumf %22, %23 : vector<128x64xf32>
    %c0_14 = arith.constant 0 : index
    %c0_15 = arith.constant 0 : index
    %25 = vector.load %arg5[%c0_14, %c0_15] : memref<1x64xf32, #tpu.memory_space<vmem>>, vector<1x64xf32>
    %26 = vector.broadcast %25 : vector<1x64xf32> to vector<128x64xf32>
    %27 = arith.mulf %24, %26 : vector<128x64xf32>
    %cst_16 = arith.constant dense<0.000000e+00> : vector<128xf32>
    %28 = vector.multi_reduction <add>, %27, %cst_16 [1] : vector<128x64xf32> to vector<128xf32>
    %29 = vector.shape_cast %28 : vector<128xf32> to vector<1x128xf32>
    %30 = vector.extract_strided_slice %1 {offsets = [3, 0], sizes = [1, 1], strides = [1, 1]} : vector<4x128xf32> to vector<1x1xf32>
    %31 = vector.broadcast %30 : vector<1x1xf32> to vector<1x128xf32>
    %32 = arith.addf %29, %31 : vector<1x128xf32>
    %cst_17 = arith.constant 0.000000e+00 : f32
    %33 = vector.broadcast %cst_17 : f32 to vector<1x128xf32>
    %34 = arith.maximumf %32, %33 : vector<1x128xf32>
    %c0_18 = arith.constant 0 : index
    %c0_19 = arith.constant 0 : index
    %35 = vector.load %arg7[%c0_18, %c0_19] : memref<1x128xf32, #tpu.memory_space<vmem>>, vector<1x128xf32>
    tpu.vector_store %arg7[%c0_18, %c0_19], %34 {strides = array<i32>} : memref<1x128xf32, #tpu.memory_space<vmem>>, vector<1x128xf32>,
    return
  }
  func.func @transform_0(%arg0: i32) -> (i32, i32) {
    %c0_i32 = arith.constant 0 : i32
    %c0_i32_0 = arith.constant 0 : i32
    return %arg0, %c0_i32 : i32, i32
  }
  func.func @transform_1(%arg0: i32) -> (i32, i32) {
    %c0_i32 = arith.constant 0 : i32
    %c0_i32_0 = arith.constant 0 : i32
    %c0_i32_1 = arith.constant 0 : i32
    return %c0_i32, %c0_i32_0 : i32, i32
  }
  func.func @transform_2(%arg0: i32) -> (i32, i32) {
    %c0_i32 = arith.constant 0 : i32
    %c0_i32_0 = arith.constant 0 : i32
    %c0_i32_1 = arith.constant 0 : i32
    return %c0_i32, %c0_i32_0 : i32, i32
  }
  func.func @transform_3(%arg0: i32) -> (i32, i32) {
    %c0_i32 = arith.constant 0 : i32
    %c0_i32_0 = arith.constant 0 : i32
    %c0_i32_1 = arith.constant 0 : i32
    return %c0_i32, %c0_i32_0 : i32, i32
  }
  func.func @transform_4(%arg0: i32) -> (i32, i32) {
    %c0_i32 = arith.constant 0 : i32
    %c0_i32_0 = arith.constant 0 : i32
    %c0_i32_1 = arith.constant 0 : i32
    return %c0_i32, %c0_i32_0 : i32, i32
  }
  func.func @transform_5(%arg0: i32) -> (i32, i32) {
    %c0_i32 = arith.constant 0 : i32
    %c0_i32_0 = arith.constant 0 : i32
    %c0_i32_1 = arith.constant 0 : i32
    return %c0_i32, %c0_i32_0 : i32, i32
  }
  func.func @transform_6(%arg0: i32) -> (i32, i32) {
    %c0_i32 = arith.constant 0 : i32
    %c0_i32_0 = arith.constant 0 : i32
    return %arg0, %c0_i32 : i32, i32
  }
}

</mosaic_0001>

<llo_original>
// kernel: tpu_custom_call.1
$region0: #{tpu_custom_call.1}
  #allocation0 [shape = 'u32[]', space=smem, size = 0x4, offset = 0x4, fixed_abs, tag = 'smem constant byte address 0x4 - core index']
  #allocation1 [shape = 'u32[72,128]{1,0:T(1,128)}', space=vmem, size = 0x9000, scoped, tag = 'internal scratch']
  %s0 = inlined_call_operand.vmem [shape: bf16[128,32], index: 0, kind: input, shape index: {}]
  %s1 = inlined_call_operand.vmem [shape: bf16[32,64], index: 1, kind: input, shape index: {}]
  %s2 = inlined_call_operand.vmem [shape: bf16[64,128], index: 2, kind: input, shape index: {}]
  %s3 = inlined_call_operand.vmem [shape: bf16[128,64], index: 3, kind: input, shape index: {}]
  %s4 = inlined_call_operand.vmem [shape: f32[1,64], index: 4, kind: input, shape index: {}]
  %s5 = inlined_call_operand.vmem [shape: f32[4,128], index: 5, kind: input, shape index: {}]
  %s6 = inlined_call_operand.hbm [shape: f32[1,128], index: 6, kind: output, shape index: {}]
  %s7 = sld [smem:[#allocation0]]
  $region34: #{tpu_custom_call.1} parent=0
    _
  %s9 = ssub.s32 1, %s7
  %s10 = scalar_select 0, %s9, %s7
  $region1: #{tpu_custom_call.1} parent=0
    #allocation2 [shape = 'u8[512]{0}', space=vmem, size = 0x400, scoped, tag = 'output window, operand 0, single buffered']
    #allocation3 [shape = 's32[1]{0}', space=sflag, size = 0x4, scoped, tag = 'scoped memory for tpu_custom_call.1']
    %11 = vsyncpa [#allocation3], 0
    // Predicated region
    $region2: #{tpu_custom_call.1} parent=1 // pred_check
      _
    $region3: #{tpu_custom_call.1} parent=1 // pred_check_branch
      %13 = sbr.rel (0) target = $region5
    $region4: #{tpu_custom_call.1} parent=1 // pred_region
      _
    $region5: #{tpu_custom_call.1} parent=1 // pred_fallthru
      _
    // Predicated region
    $region6: #{tpu_custom_call.1} parent=1 // pred_check
      _
    $region7: #{tpu_custom_call.1} parent=1 // pred_check_branch
      %15 = sbr.rel (0) target = $region9
    $region8: #{tpu_custom_call.1} parent=1 // pred_region
      _
    $region9: #{tpu_custom_call.1} parent=1 // pred_fallthru
      _
    // Predicated region
    $region10: #{tpu_custom_call.1} parent=1 // pred_check
      _
    $region11: #{tpu_custom_call.1} parent=1 // pred_check_branch
      %17 = sbr.rel (0) target = $region13
    $region12: #{tpu_custom_call.1} parent=1 // pred_region
      _
    $region13: #{tpu_custom_call.1} parent=1 // pred_fallthru
      _
    // Predicated region
    $region14: #{tpu_custom_call.1} parent=1 // pred_check
      _
    $region15: #{tpu_custom_call.1} parent=1 // pred_check_branch
      %19 = sbr.rel (0) target = $region17
    $region16: #{tpu_custom_call.1} parent=1 // pred_region
      _
    $region17: #{tpu_custom_call.1} parent=1 // pred_fallthru
      _
    // Predicated region
    $region18: #{tpu_custom_call.1} parent=1 // pred_check
      _
    $region19: #{tpu_custom_call.1} parent=1 // pred_check_branch
      %21 = sbr.rel (0) target = $region21
    $region20: #{tpu_custom_call.1} parent=1 // pred_region
      _
    $region21: #{tpu_custom_call.1} parent=1 // pred_fallthru
      _
    // Predicated region
    $region22: #{tpu_custom_call.1} parent=1 // pred_check
      _
    $region23: #{tpu_custom_call.1} parent=1 // pred_check_branch
      %23 = sbr.rel (0) target = $region25
    $region24: #{tpu_custom_call.1} parent=1 // pred_region
      _
    $region25: #{tpu_custom_call.1} parent=1 // pred_fallthru
      _
    %v25 = vld [vmem:[%s0] sm:$0xf]
    %v26 = vld [vmem:[%s0 + $0x4] sm:$0xf]
    %v27 = vld [vmem:[%s0 + $0x8] sm:$0xf]
    %v28 = vld [vmem:[%s0 + $0xc] sm:$0xf]
    %v29 = vld [vmem:[%s0 + $0x10] sm:$0xf]
    %v30 = vld [vmem:[%s0 + $0x14] sm:$0xf]
    %v31 = vld [vmem:[%s0 + $0x18] sm:$0xf]
    %v32 = vld [vmem:[%s0 + $0x1c] sm:$0xf]
    %v33 = vld [vmem:[%s0 + $0x20] sm:$0xf]
    %v34 = vld [vmem:[%s0 + $0x24] sm:$0xf]
    %v35 = vld [vmem:[%s0 + $0x28] sm:$0xf]
    %v36 = vld [vmem:[%s0 + $0x2c] sm:$0xf]
    %v37 = vld [vmem:[%s0 + $0x30] sm:$0xf]
    %v38 = vld [vmem:[%s0 + $0x34] sm:$0xf]
    %v39 = vld [vmem:[%s0 + $0x38] sm:$0xf]
    %v40 = vld [vmem:[%s0 + $0x3c] sm:$0xf]
    %v41 = vld [vmem:[%s5] sm:$0xf]
    %v42 = vld [vmem:[%s1] sm:$0xf]
    %v43 = vld [vmem:[%s1 + $0x4] sm:$0xf]
    %v44 = vld [vmem:[%s1 + $0x8] sm:$0xf]
    %v45 = vld [vmem:[%s1 + $0xc] sm:$0xf]
    %v46 = vperm.slane %v41, 0
    %v63 = vunpack.c.l.b16 %v25
    %v64 = vunpack.c.l.b16 %v26
    %v65 = vunpack.c.l.b16 %v27
    %v66 = vunpack.c.l.b16 %v28
    %v67 = vunpack.c.l.b16 %v29
    %v68 = vunpack.c.l.b16 %v30
    %v69 = vunpack.c.l.b16 %v31
    %v70 = vunpack.c.l.b16 %v32
    %v71 = vunpack.c.l.b16 %v33
    %v72 = vunpack.c.l.b16 %v34
    %v73 = vunpack.c.l.b16 %v35
    %v74 = vunpack.c.l.b16 %v36
    %v75 = vunpack.c.l.b16 %v37
    %v76 = vunpack.c.l.b16 %v38
    %v77 = vunpack.c.l.b16 %v39
    %v78 = vunpack.c.l.b16 %v40
    %v79 = vpack.c.b16 %v64, %v63
    %v80 = vpack.c.b16 %v66, %v65
    %v81 = vpack.c.b16 %v68, %v67
    %v82 = vpack.c.b16 %v70, %v69
    %v83 = vpack.c.b16 %v72, %v71
    %v84 = vpack.c.b16 %v74, %v73
    %v85 = vpack.c.b16 %v76, %v75
    %v86 = vpack.c.b16 %v78, %v77
    %v91 = vunpack.c.l.b16 %v42
    %v92 = vunpack.c.l.b16 %v43
    %v93 = vunpack.c.l.b16 %v44
    %v94 = vunpack.c.l.b16 %v45
    %v95 = vpack.c.b16 %v92, %v91
    %v96 = vpack.c.b16 %v94, %v93
    %vm99 = vcmask 261120
    %v101 = vsel %vm99, %v79, 0
    %v104 = vsel %vm99, %v80, 0
    %v107 = vsel %vm99, %v81, 0
    %v110 = vsel %vm99, %v82, 0
    %v113 = vsel %vm99, %v83, 0
    %v116 = vsel %vm99, %v84, 0
    %v119 = vsel %vm99, %v85, 0
    %v122 = vsel %vm99, %v86, 0
    %124 = vmatpush.bf16.msra.mxu0 0
    %125 = vmatpush.bf16.msra.mxu0 0
    %126 = vmatpush.bf16.msra.mxu0 0
    %127 = vmatpush.bf16.msra.mxu0 0
    %128 = vmatpush.bf16.msra.mxu0 0
    %129 = vmatpush.bf16.msra.mxu0 0
    %130 = vmatpush.bf16.msra.mxu0 %v96
    %131 = vmatpush.bf16.msra.mxu0 %v95
    %132 = vmatmul.bf16.gmra.mxu0 %v101
    %v133 = vpop.f32.mrf.mxu0
    %v134 = vadd.f32 %v46, %v133
    %v135 = vpop.f32.mrf.mxu0
    %v136 = vadd.f32 %v46, %v135
    %137 = vmatmul.bf16.gmra.mxu0 %v104
    %v138 = vpop.f32.mrf.mxu0
    %v139 = vadd.f32 %v46, %v138
    %v140 = vpop.f32.mrf.mxu0
    %v141 = vadd.f32 %v46, %v140
    %142 = vmatmul.bf16.gmra.mxu0 %v107
    %v143 = vpop.f32.mrf.mxu0
    %v144 = vadd.f32 %v46, %v143
    %v145 = vpop.f32.mrf.mxu0
    %v146 = vadd.f32 %v46, %v145
    %147 = vmatmul.bf16.gmra.mxu0 %v110
    %v148 = vpop.f32.mrf.mxu0
    %v149 = vadd.f32 %v46, %v148
    %v150 = vpop.f32.mrf.mxu0
    %v151 = vadd.f32 %v46, %v150
    %152 = vmatmul.bf16.gmra.mxu0 %v113
    %v153 = vpop.f32.mrf.mxu0
    %v154 = vadd.f32 %v46, %v153
    %v155 = vpop.f32.mrf.mxu0
    %v156 = vadd.f32 %v46, %v155
    %157 = vmatmul.bf16.gmra.mxu0 %v116
    %v158 = vpop.f32.mrf.mxu0
    %v159 = vadd.f32 %v46, %v158
    %v160 = vpop.f32.mrf.mxu0
    %v161 = vadd.f32 %v46, %v160
    %162 = vmatmul.bf16.gmra.mxu0 %v119
    %v163 = vpop.f32.mrf.mxu0
    %v164 = vadd.f32 %v46, %v163
    %v165 = vpop.f32.mrf.mxu0
    %v166 = vadd.f32 %v46, %v165
    %167 = vmatmul.bf16.gmra.mxu0 %v122
    %v168 = vpop.f32.mrf.mxu0
    %v169 = vadd.f32 %v46, %v168
    %v170 = vpop.f32.mrf.mxu0
    %v171 = vadd.f32 %v46, %v170
    %172 = vdwg.mxu0
    %v173 = vmax.f32 %v134, 0.0
    %v174 = vmax.f32 %v136, 0.0
    %v175 = vmax.f32 %v139, 0.0
    %v176 = vmax.f32 %v141, 0.0
    %v177 = vmax.f32 %v144, 0.0
    %v178 = vmax.f32 %v146, 0.0
    %v179 = vmax.f32 %v149, 0.0
    %v180 = vmax.f32 %v151, 0.0
    %v181 = vmax.f32 %v154, 0.0
    %v182 = vmax.f32 %v156, 0.0
    %v183 = vmax.f32 %v159, 0.0
    %v184 = vmax.f32 %v161, 0.0
    %v185 = vmax.f32 %v164, 0.0
    %v186 = vmax.f32 %v166, 0.0
    %v187 = vmax.f32 %v169, 0.0
    %v188 = vmax.f32 %v171, 0.0
    %v189 = vpack.c.bf16 %v174, %v173
    %v190 = vpack.c.bf16 %v176, %v175
    %v191 = vpack.c.bf16 %v178, %v177
    %v192 = vpack.c.bf16 %v180, %v179
    %v193 = vpack.c.bf16 %v182, %v181
    %v194 = vpack.c.bf16 %v184, %v183
    %v195 = vpack.c.bf16 %v186, %v185
    %v196 = vpack.c.bf16 %v188, %v187
    %v197 = vld [vmem:[%s2] sm:$0xf]
    %v198 = vld [vmem:[%s2 + $0x4] sm:$0xf]
    %v199 = vld [vmem:[%s2 + $0x8] sm:$0xf]
    %v200 = vld [vmem:[%s2 + $0xc] sm:$0xf]
    %v201 = vld [vmem:[%s2 + $0x10] sm:$0xf]
    %v202 = vld [vmem:[%s2 + $0x14] sm:$0xf]
    %v203 = vld [vmem:[%s2 + $0x18] sm:$0xf]
    %v204 = vld [vmem:[%s2 + $0x1c] sm:$0xf]
    %v205 = vperm.slane %v41, 1
    %v214 = vunpack.c.l.b16 %v197
    %v215 = vunpack.c.l.b16 %v198
    %v216 = vunpack.c.l.b16 %v199
    %v217 = vunpack.c.l.b16 %v200
    %v218 = vunpack.c.l.b16 %v201
    %v219 = vunpack.c.l.b16 %v202
    %v220 = vunpack.c.l.b16 %v203
    %v221 = vunpack.c.l.b16 %v204
    %v222 = vpack.c.b16 %v215, %v214
    %v223 = vpack.c.b16 %v217, %v216
    %v224 = vpack.c.b16 %v219, %v218
    %v225 = vpack.c.b16 %v221, %v220
    %vm230 = vcmask 523264
    %v232 = vsel %vm230, %v189, 0
    %v235 = vsel %vm230, %v190, 0
    %v238 = vsel %vm230, %v191, 0
    %v241 = vsel %vm230, %v192, 0
    %v244 = vsel %vm230, %v193, 0
    %v247 = vsel %vm230, %v194, 0
    %v250 = vsel %vm230, %v195, 0
    %v253 = vsel %vm230, %v196, 0
    %255 = vmatpush.bf16.msra.mxu0 0
    %256 = vmatpush.bf16.msra.mxu0 0
    %257 = vmatpush.bf16.msra.mxu0 0
    %258 = vmatpush.bf16.msra.mxu0 0
    %259 = vmatpush.bf16.msra.mxu0 %v225
    %260 = vmatpush.bf16.msra.mxu0 %v224
    %261 = vmatpush.bf16.msra.mxu0 %v223
    %262 = vmatpush.bf16.msra.mxu0 %v222
    %263 = vmatmul.bf16.gmra.mxu0 %v232
    %v264 = vpop.f32.mrf.mxu0
    %v265 = vadd.f32 %v205, %v264
    %v266 = vpop.f32.mrf.mxu0
    %v267 = vadd.f32 %v205, %v266
    %268 = vmatmul.bf16.gmra.mxu0 %v235
    %v269 = vpop.f32.mrf.mxu0
    %v270 = vadd.f32 %v205, %v269
    %v271 = vpop.f32.mrf.mxu0
    %v272 = vadd.f32 %v205, %v271
    %273 = vmatmul.bf16.gmra.mxu0 %v238
    %v274 = vpop.f32.mrf.mxu0
    %v275 = vadd.f32 %v205, %v274
    %v276 = vpop.f32.mrf.mxu0
    %v277 = vadd.f32 %v205, %v276
    %278 = vmatmul.bf16.gmra.mxu0 %v241
    %v279 = vpop.f32.mrf.mxu0
    %v280 = vadd.f32 %v205, %v279
    %v281 = vpop.f32.mrf.mxu0
    %v282 = vadd.f32 %v205, %v281
    %283 = vmatmul.bf16.gmra.mxu0 %v244
    %v284 = vpop.f32.mrf.mxu0
    %v285 = vadd.f32 %v205, %v284
    %v286 = vpop.f32.mrf.mxu0
    %v287 = vadd.f32 %v205, %v286
    %288 = vmatmul.bf16.gmra.mxu0 %v247
    %v289 = vpop.f32.mrf.mxu0
    %v290 = vadd.f32 %v205, %v289
    %v291 = vpop.f32.mrf.mxu0
    %v292 = vadd.f32 %v205, %v291
    %293 = vmatmul.bf16.gmra.mxu0 %v250
    %v294 = vpop.f32.mrf.mxu0
    %v295 = vadd.f32 %v205, %v294
    %v296 = vpop.f32.mrf.mxu0
    %v297 = vadd.f32 %v205, %v296
    %298 = vmatmul.bf16.gmra.mxu0 %v253
    %v299 = vpop.f32.mrf.mxu0
    %v300 = vadd.f32 %v205, %v299
    %v301 = vpop.f32.mrf.mxu0
    %v302 = vadd.f32 %v205, %v301
    %303 = vdwg.mxu0
    %v304 = vmax.f32 %v265, 0.0
    %v305 = vmax.f32 %v267, 0.0
    %v306 = vmax.f32 %v270, 0.0
    %v307 = vmax.f32 %v272, 0.0
    %v308 = vmax.f32 %v275, 0.0
    %v309 = vmax.f32 %v277, 0.0
    %v310 = vmax.f32 %v280, 0.0
    %v311 = vmax.f32 %v282, 0.0
    %v312 = vmax.f32 %v285, 0.0
    %v313 = vmax.f32 %v287, 0.0
    %v314 = vmax.f32 %v290, 0.0
    %v315 = vmax.f32 %v292, 0.0
    %v316 = vmax.f32 %v295, 0.0
    %v317 = vmax.f32 %v297, 0.0
    %v318 = vmax.f32 %v300, 0.0
    %v319 = vmax.f32 %v302, 0.0
    %v320 = vpack.c.bf16 %v305, %v304
    %v321 = vpack.c.bf16 %v307, %v306
    %v322 = vpack.c.bf16 %v309, %v308
    %v323 = vpack.c.bf16 %v311, %v310
    %v324 = vpack.c.bf16 %v313, %v312
    %v325 = vpack.c.bf16 %v315, %v314
    %v326 = vpack.c.bf16 %v317, %v316
    %v327 = vpack.c.bf16 %v319, %v318
    %v328 = vld [vmem:[%s3] sm:$0xf]
    %v329 = vld [vmem:[%s3 + $0x4] sm:$0xf]
    %v330 = vld [vmem:[%s3 + $0x8] sm:$0xf]
    %v331 = vld [vmem:[%s3 + $0xc] sm:$0xf]
    %v332 = vld [vmem:[%s3 + $0x10] sm:$0xf]
    %v333 = vld [vmem:[%s3 + $0x14] sm:$0xf]
    %v334 = vld [vmem:[%s3 + $0x18] sm:$0xf]
    %v335 = vld [vmem:[%s3 + $0x1c] sm:$0xf]
    %v336 = vld [vmem:[%s3 + $0x20] sm:$0xf]
    %v337 = vld [vmem:[%s3 + $0x24] sm:$0xf]
    %v338 = vld [vmem:[%s3 + $0x28] sm:$0xf]
    %v339 = vld [vmem:[%s3 + $0x2c] sm:$0xf]
    %v340 = vld [vmem:[%s3 + $0x30] sm:$0xf]
    %v341 = vld [vmem:[%s3 + $0x34] sm:$0xf]
    %v342 = vld [vmem:[%s3 + $0x38] sm:$0xf]
    %v343 = vld [vmem:[%s3 + $0x3c] sm:$0xf]
    %v344 = vperm.slane %v41, 2
    %v361 = vunpack.c.l.b16 %v328
    %v362 = vunpack.c.l.b16 %v329
    %v363 = vunpack.c.l.b16 %v330
    %v364 = vunpack.c.l.b16 %v331
    %v365 = vunpack.c.l.b16 %v332
    %v366 = vunpack.c.l.b16 %v333
    %v367 = vunpack.c.l.b16 %v334
    %v368 = vunpack.c.l.b16 %v335
    %v369 = vunpack.c.l.b16 %v336
    %v370 = vunpack.c.l.b16 %v337
    %v371 = vunpack.c.l.b16 %v338
    %v372 = vunpack.c.l.b16 %v339
    %v373 = vunpack.c.l.b16 %v340
    %v374 = vunpack.c.l.b16 %v341
    %v375 = vunpack.c.l.b16 %v342
    %v376 = vunpack.c.l.b16 %v343
    %v377 = vpack.c.b16 %v362, %v361
    %v378 = vpack.c.b16 %v364, %v363
    %v379 = vpack.c.b16 %v366, %v365
    %v380 = vpack.c.b16 %v368, %v367
    %v381 = vpack.c.b16 %v370, %v369
    %v382 = vpack.c.b16 %v372, %v371
    %v383 = vpack.c.b16 %v374, %v373
    %v384 = vpack.c.b16 %v376, %v375
    %393 = vmatpush.bf16.msra.mxu0 %v384
    %394 = vmatpush.bf16.msra.mxu0 %v383
    %395 = vmatpush.bf16.msra.mxu0 %v382
    %396 = vmatpush.bf16.msra.mxu0 %v381
    %397 = vmatpush.bf16.msra.mxu0 %v380
    %398 = vmatpush.bf16.msra.mxu0 %v379
    %399 = vmatpush.bf16.msra.mxu0 %v378
    %400 = vmatpush.bf16.msra.mxu0 %v377
    %401 = vmatmul.bf16.gmra.mxu0 %v320
    %v402 = vpop.f32.mrf.mxu0
    %v403 = vadd.f32 %v344, %v402
    %v404 = vpop.f32.mrf.mxu0
    %v405 = vadd.f32 %v344, %v404
    %406 = vmatmul.bf16.gmra.mxu0 %v321
    %v407 = vpop.f32.mrf.mxu0
    %v408 = vadd.f32 %v344, %v407
    %v409 = vpop.f32.mrf.mxu0
    %v410 = vadd.f32 %v344, %v409
    %411 = vmatmul.bf16.gmra.mxu0 %v322
    %v412 = vpop.f32.mrf.mxu0
    %v413 = vadd.f32 %v344, %v412
    %v414 = vpop.f32.mrf.mxu0
    %v415 = vadd.f32 %v344, %v414
    %416 = vmatmul.bf16.gmra.mxu0 %v323
    %v417 = vpop.f32.mrf.mxu0
    %v418 = vadd.f32 %v344, %v417
    %v419 = vpop.f32.mrf.mxu0
    %v420 = vadd.f32 %v344, %v419
    %421 = vmatmul.bf16.gmra.mxu0 %v324
    %v422 = vpop.f32.mrf.mxu0
    %v423 = vadd.f32 %v344, %v422
    %v424 = vpop.f32.mrf.mxu0
    %v425 = vadd.f32 %v344, %v424
    %426 = vmatmul.bf16.gmra.mxu0 %v325
    %v427 = vpop.f32.mrf.mxu0
    %v428 = vadd.f32 %v344, %v427
    %v429 = vpop.f32.mrf.mxu0
    %v430 = vadd.f32 %v344, %v429
    %431 = vmatmul.bf16.gmra.mxu0 %v326
    %v432 = vpop.f32.mrf.mxu0
    %v433 = vadd.f32 %v344, %v432
    %v434 = vpop.f32.mrf.mxu0
    %v435 = vadd.f32 %v344, %v434
    %436 = vmatmul.bf16.gmra.mxu0 %v327
    %v437 = vpop.f32.mrf.mxu0
    %v438 = vadd.f32 %v344, %v437
    %v439 = vpop.f32.mrf.mxu0
    %v440 = vadd.f32 %v344, %v439
    %441 = vdwg.mxu0
    %v442 = vmax.f32 %v403, 0.0
    %v443 = vmax.f32 %v405, 0.0
    %v444 = vmax.f32 %v408, 0.0
    %v445 = vmax.f32 %v410, 0.0
    %v446 = vmax.f32 %v413, 0.0
    %v447 = vmax.f32 %v415, 0.0
    %v448 = vmax.f32 %v418, 0.0
    %v449 = vmax.f32 %v420, 0.0
    %v450 = vmax.f32 %v423, 0.0
    %v451 = vmax.f32 %v425, 0.0
    %v452 = vmax.f32 %v428, 0.0
    %v453 = vmax.f32 %v430, 0.0
    %v454 = vmax.f32 %v433, 0.0
    %v455 = vmax.f32 %v435, 0.0
    %v456 = vmax.f32 %v438, 0.0
    %v457 = vmax.f32 %v440, 0.0
    %v458 = vld [vmem:[%s4] sm:$0x1]
    %v460 = vperm.slane %v458, 0
    %v462 = vmul.f32 %v442, %v460
    %v463 = vmul.f32 %v443, %v460
    %v464 = vmul.f32 %v444, %v460
    %v465 = vmul.f32 %v445, %v460
    %v466 = vmul.f32 %v446, %v460
    %v467 = vmul.f32 %v447, %v460
    %v468 = vmul.f32 %v448, %v460
    %v469 = vmul.f32 %v449, %v460
    %v470 = vmul.f32 %v450, %v460
    %v471 = vmul.f32 %v451, %v460
    %v472 = vmul.f32 %v452, %v460
    %v473 = vmul.f32 %v453, %v460
    %v474 = vmul.f32 %v454, %v460
    %v475 = vmul.f32 %v455, %v460
    %v476 = vmul.f32 %v456, %v460
    %v477 = vmul.f32 %v457, %v460
    %v478 = vsel %vm230, %v462, 0.0
    %479 = vadd.xlane.f32.xlu0 %v478
    %v480 = vpop.xlane.xlu0 %479
    %v481 = vsel %vm230, %v463, 0.0
    %482 = vadd.xlane.f32.xlu0 %v481
    %v483 = vpop.xlane.xlu0 %482
    %v484 = vsel %vm230, %v464, 0.0
    %485 = vadd.xlane.f32.xlu0 %v484
    %v486 = vpop.xlane.xlu0 %485
    %v487 = vsel %vm230, %v465, 0.0
    %488 = vadd.xlane.f32.xlu0 %v487
    %v489 = vpop.xlane.xlu0 %488
    %v490 = vsel %vm230, %v466, 0.0
    %491 = vadd.xlane.f32.xlu0 %v490
    %v492 = vpop.xlane.xlu0 %491
    %v493 = vsel %vm230, %v467, 0.0
    %494 = vadd.xlane.f32.xlu0 %v493
    %v495 = vpop.xlane.xlu0 %494
    %v496 = vsel %vm230, %v468, 0.0
    %497 = vadd.xlane.f32.xlu0 %v496
    %v498 = vpop.xlane.xlu0 %497
    %v499 = vsel %vm230, %v469, 0.0
    %500 = vadd.xlane.f32.xlu0 %v499
    %v501 = vpop.xlane.xlu0 %500
    %v502 = vsel %vm230, %v470, 0.0
    %503 = vadd.xlane.f32.xlu0 %v502
    %v504 = vpop.xlane.xlu0 %503
    %v505 = vsel %vm230, %v471, 0.0
    %506 = vadd.xlane.f32.xlu0 %v505
    %v507 = vpop.xlane.xlu0 %506
    %v508 = vsel %vm230, %v472, 0.0
    %509 = vadd.xlane.f32.xlu0 %v508
    %v510 = vpop.xlane.xlu0 %509
    %v511 = vsel %vm230, %v473, 0.0
    %512 = vadd.xlane.f32.xlu0 %v511
    %v513 = vpop.xlane.xlu0 %512
    %v514 = vsel %vm230, %v474, 0.0
    %515 = vadd.xlane.f32.xlu0 %v514
    %v516 = vpop.xlane.xlu0 %515
    %v517 = vsel %vm230, %v475, 0.0
    %518 = vadd.xlane.f32.xlu0 %v517
    %v519 = vpop.xlane.xlu0 %518
    %v520 = vsel %vm230, %v476, 0.0
    %521 = vadd.xlane.f32.xlu0 %v520
    %v522 = vpop.xlane.xlu0 %521
    %v523 = vsel %vm230, %v477, 0.0
    %524 = vadd.xlane.f32.xlu0 %v523
    %v525 = vpop.xlane.xlu0 %524
    %527 = vset.pattern.permute.xlu0 0
    %528 = vperm.xlu0 %527, %v41
    %v529 = vpop.permute.xlu0 %528
    %v530 = vperm.slane %v529, 3
    %v532 = vadd.f32 %v480, %v530
    %v533 = vadd.f32 %v483, %v530
    %v534 = vadd.f32 %v486, %v530
    %v535 = vadd.f32 %v489, %v530
    %v536 = vadd.f32 %v492, %v530
    %v537 = vadd.f32 %v495, %v530
    %v538 = vadd.f32 %v498, %v530
    %v539 = vadd.f32 %v501, %v530
    %v540 = vadd.f32 %v504, %v530
    %v541 = vadd.f32 %v507, %v530
    %v542 = vadd.f32 %v510, %v530
    %v543 = vadd.f32 %v513, %v530
    %v544 = vadd.f32 %v516, %v530
    %v545 = vadd.f32 %v519, %v530
    %v546 = vadd.f32 %v522, %v530
    %v547 = vadd.f32 %v525, %v530
    %v548 = vmax.f32 %v532, 0.0
    %v549 = vmax.f32 %v533, 0.0
    %v550 = vmax.f32 %v534, 0.0
    %v551 = vmax.f32 %v535, 0.0
    %v552 = vmax.f32 %v536, 0.0
    %v553 = vmax.f32 %v537, 0.0
    %v554 = vmax.f32 %v538, 0.0
    %v555 = vmax.f32 %v539, 0.0
    %v556 = vmax.f32 %v540, 0.0
    %v557 = vmax.f32 %v541, 0.0
    %v558 = vmax.f32 %v542, 0.0
    %v559 = vmax.f32 %v543, 0.0
    %v560 = vmax.f32 %v544, 0.0
    %v561 = vmax.f32 %v545, 0.0
    %v562 = vmax.f32 %v546, 0.0
    %v563 = vmax.f32 %v547, 0.0
    %580 = vset.pattern.permute.xlu0 0
    %581 = vperm.xlu0 %580, %v548
    %v582 = vpop.permute.xlu0 %581
    %583 = vset.pattern.permute.xlu0 0
    %584 = vperm.xlu0 %583, %v549
    %v585 = vpop.permute.xlu0 %584
    %586 = vset.pattern.permute.xlu0 0
    %587 = vperm.xlu0 %586, %v550
    %v588 = vpop.permute.xlu0 %587
    %589 = vset.pattern.permute.xlu0 0
    %590 = vperm.xlu0 %589, %v551
    %v591 = vpop.permute.xlu0 %590
    %592 = vset.pattern.permute.xlu0 0
    %593 = vperm.xlu0 %592, %v552
    %v594 = vpop.permute.xlu0 %593
    %595 = vset.pattern.permute.xlu0 0
    %596 = vperm.xlu0 %595, %v553
    %v597 = vpop.permute.xlu0 %596
    %598 = vset.pattern.permute.xlu0 0
    %599 = vperm.xlu0 %598, %v554
    %v600 = vpop.permute.xlu0 %599
    %601 = vset.pattern.permute.xlu0 0
    %602 = vperm.xlu0 %601, %v555
    %v603 = vpop.permute.xlu0 %602
    %604 = vset.pattern.permute.xlu0 0
    %605 = vperm.xlu0 %604, %v556
    %v606 = vpop.permute.xlu0 %605
    %607 = vset.pattern.permute.xlu0 0
    %608 = vperm.xlu0 %607, %v557
    %v609 = vpop.permute.xlu0 %608
    %610 = vset.pattern.permute.xlu0 0
    %611 = vperm.xlu0 %610, %v558
    %v612 = vpop.permute.xlu0 %611
    %613 = vset.pattern.permute.xlu0 0
    %614 = vperm.xlu0 %613, %v559
    %v615 = vpop.permute.xlu0 %614
    %616 = vset.pattern.permute.xlu0 0
    %617 = vperm.xlu0 %616, %v560
    %v618 = vpop.permute.xlu0 %617
    %619 = vset.pattern.permute.xlu0 0
    %620 = vperm.xlu0 %619, %v561
    %v621 = vpop.permute.xlu0 %620
    %622 = vset.pattern.permute.xlu0 0
    %623 = vperm.xlu0 %622, %v562
    %v624 = vpop.permute.xlu0 %623
    %625 = vset.pattern.permute.xlu0 0
    %626 = vperm.xlu0 %625, %v563
    %v627 = vpop.permute.xlu0 %626
    %v628 = vlaneseq
    %v629 = vand.u32 %v628, 127
    %v630 = vperm.slane %v582, %v629
    %v631 = vadd.s32 %v629, 4294967288
    %v632 = vperm.slane %v585, %v631
    %vm633 = vcmask 130112
    %v634 = vsel %vm633, %v632, %v630
    %v635 = vadd.s32 %v629, 4294967280
    %v636 = vperm.slane %v588, %v635
    %vm637 = vcmask 195712
    %v638 = vsel %vm637, %v636, %v634
    %v639 = vadd.s32 %v629, 4294967272
    %v640 = vperm.slane %v591, %v639
    %vm641 = vcmask 261312
    %v642 = vsel %vm641, %v640, %v638
    %v643 = vadd.s32 %v629, 4294967264
    %v644 = vperm.slane %v594, %v643
    %vm645 = vcmask 326912
    %v646 = vsel %vm645, %v644, %v642
    %v647 = vadd.s32 %v629, 4294967256
    %v648 = vperm.slane %v597, %v647
    %vm649 = vcmask 392512
    %v650 = vsel %vm649, %v648, %v646
    %v651 = vadd.s32 %v629, 4294967248
    %v652 = vperm.slane %v600, %v651
    %vm653 = vcmask 458112
    %v654 = vsel %vm653, %v652, %v650
    %v655 = vadd.s32 %v629, 4294967240
    %v656 = vperm.slane %v603, %v655
    %vm657 = vcmask 523712
    %v658 = vsel %vm657, %v656, %v654
    %v659 = vadd.s32 %v629, 4294967232
    %v660 = vperm.slane %v606, %v659
    %vm661 = vcmask 589312
    %v662 = vsel %vm661, %v660, %v658
    %v663 = vadd.s32 %v629, 4294967224
    %v664 = vperm.slane %v609, %v663
    %vm665 = vcmask 654912
    %v666 = vsel %vm665, %v664, %v662
    %v667 = vadd.s32 %v629, 4294967216
    %v668 = vperm.slane %v612, %v667
    %vm669 = vcmask 720512
    %v670 = vsel %vm669, %v668, %v666
    %v671 = vadd.s32 %v629, 4294967208
    %v672 = vperm.slane %v615, %v671
    %vm673 = vcmask 786112
    %v674 = vsel %vm673, %v672, %v670
    %v675 = vadd.s32 %v629, 4294967200
    %v676 = vperm.slane %v618, %v675
    %vm677 = vcmask 851712
    %v678 = vsel %vm677, %v676, %v674
    %v679 = vadd.s32 %v629, 4294967192
    %v680 = vperm.slane %v621, %v679
    %vm681 = vcmask 917312
    %v682 = vsel %vm681, %v680, %v678
    %v683 = vadd.s32 %v629, 4294967184
    %v684 = vperm.slane %v624, %v683
    %vm685 = vcmask 982912
    %v686 = vsel %vm685, %v684, %v682
    %v687 = vadd.s32 %v629, 4294967176
    %v688 = vperm.slane %v627, %v687
    %vm689 = vcmask 1048512
    %v690 = vsel %vm689, %v688, %v686
    %692 = vst [vmem:[#allocation2] sm:$0x1] %v690
    // Predicated region
    $region26: #{tpu_custom_call.1} parent=1 // pred_check
      _
    $region27: #{tpu_custom_call.1} parent=1 // pred_check_branch
      %694 = sbr.rel (0) target = $region29
    $region28: #{tpu_custom_call.1} parent=1 // pred_region
      %696 = vsyncadd [#allocation3], 0
      %s698 = sshll.u32 [#allocation2], 4
      %s699 = int_to_ptr.vmem [resolvable:$true] %s698
      %s700 = sshll.u32 %s6, 4
      %s701 = int_to_ptr.hbm [resolvable:$true] %s700
      %703 = dma.vmem_to_hbm [thread:$0]  %s699, 16, %s701, [#allocation3]
    $region29: #{tpu_custom_call.1} parent=1 // pred_fallthru
      _
    // Predicated region
    $region30: #{tpu_custom_call.1} parent=1 // pred_check
      _
    $region31: #{tpu_custom_call.1} parent=1 // pred_check_branch
      %705 = sbr.rel (0) target = $region33
    $region32: #{tpu_custom_call.1} parent=1 // pred_region
      %707 = dma.done [#allocation3], 16
    $region33: #{tpu_custom_call.1} parent=1 // pred_fallthru
      _
    %708 = vsyncpa [#allocation3], 1

</llo_original>
